<compile_context>
chip_gen: v5e
topology: v5e:2x2
jax: 0.10.0
libtpu: 0.0.40
codegen_flags: <defaults>
</compile_context>

<pallas_src>
import functools

import jax
import jax.numpy as jnp
from jax.experimental import pallas as pl
from jax.experimental.pallas import tpu as pltpu


_SINGLE_BLOCK_M_CEIL = 512  # below this the Gram is HBM-bound on all generations


def _round_up(x, m):
    return ((x + m - 1) // m) * m


def _tpu_params():
    """Per-generation sizing: (vmem_limit_bytes, preferred output tile tm)."""
    vmem_cap = 128 * 1024 * 1024
    try:
        info = pltpu.get_tpu_info()
        vmem_cap = int(getattr(info, "vmem_capacity_bytes", vmem_cap)) or vmem_cap
    except Exception:
        pass
    kind = ""
    try:
        kind = jax.devices()[0].device_kind.lower()
    except Exception:
        pass
    # Leave 1/4 of physical VMEM as headroom: ~48 MiB on v7x (64 MiB physical),
    # ~96 MiB on v5e/v6e (128 MiB physical; default scoped limit is only 16/32).
    vmem_limit = max(int(vmem_cap) * 3 // 4, 32 * 1024 * 1024)
    # v5e's MXU is 4x128x128 -> 128-wide output tiles fill it; v6e/v7x are
    # 2x256x256 -> prefer 256-wide output tiles.
    preferred_tm = 128 if ("v5e" in kind or "v5 lite" in kind) else 256
    return vmem_limit, preferred_tm


def _pick_k_tile(k_pad, max_tk, max_k_tile=None):
    """Largest multiple-of-128 divisor of k_pad that fits the VMEM budget."""
    cap = max_tk if max_k_tile is None else min(max_tk, max_k_tile)
    cap = max(int(cap), 128)
    n128 = k_pad // 128
    best = 128
    for div in range(1, n128 + 1):
        if n128 % div == 0 and div * 128 <= cap:
            best = div * 128
    return best


# --------------------------- single-output-block kernels ---------------------


def _gram_single_nk1(f_ref, g_ref, *, inv_total, compute_dtype):
    """One K tile covers the whole contraction: no init / no accumulation."""
    f = f_ref[...].astype(compute_dtype)
    # Contract axis 1 of both operands (F @ F.T with the transpose folded into
    # the MXU operand load; no per-step XLU transpose — important on v5e).
    g = jax.lax.dot_general(
        f, f, dimension_numbers=(((1,), (1,)), ((), ())),
        preferred_element_type=jnp.float32)
    g_ref[...] = g * inv_total


def _gram_single_acc(f_ref, g_ref, *, inv_total, compute_dtype):
    """Accumulate F_k @ F_k.T directly into the resident f32 output block."""
    k = pl.program_id(0)

    @pl.when(k == 0)
    def _():
        g_ref[...] = jnp.zeros_like(g_ref)

    f = f_ref[...].astype(compute_dtype)
    g_ref[...] += jax.lax.dot_general(
        f, f, dimension_numbers=(((1,), (1,)), ((), ())),
        preferred_element_type=jnp.float32)

    @pl.when(k == pl.num_programs(0) - 1)
    def _():
        g_ref[...] = g_ref[...] * inv_total


# ------------------- symmetric tiled kernels (upper-triangular) --------------


def _gram_pairs_nk1(bi_ref, bj_ref, fi_ref, fj_ref, g_ref, *, inv_total):
    del bi_ref, bj_ref  # consumed by the index_maps only
    g = jax.lax.dot_general(
        fi_ref[...], fj_ref[...], dimension_numbers=(((1,), (1,)), ((), ())),
        preferred_element_type=jnp.float32)
    g_ref[...] = g * inv_total


def _gram_pairs_acc(bi_ref, bj_ref, fi_ref, fj_ref, g_ref, *, inv_total):
    del bi_ref, bj_ref  # consumed by the index_maps only
    k = pl.program_id(1)

    @pl.when(k == 0)
    def _():
        g_ref[...] = jnp.zeros_like(g_ref)

    g_ref[...] += jax.lax.dot_general(
        fi_ref[...], fj_ref[...], dimension_numbers=(((1,), (1,)), ((), ())),
        preferred_element_type=jnp.float32)

    @pl.when(k == pl.num_programs(1) - 1)
    def _():
        g_ref[...] = g_ref[...] * inv_total


# --------------------------------- wrapper ------------------------------------


def gram_matrix(x, *, compute_dtype=jnp.bfloat16, max_k_tile=None):
    """Gram matrix of an NCHW tensor: (F @ F.T) / (a*b*c*d), F = x.view(a*b, c*d).

    Returns float32 (M, M), M = a*b.
      compute_dtype: MXU operand dtype. bf16 (default) halves HBM traffic and
        runs single-pass on the MXU; pass jnp.float32 for bit-parity with the
        f32 PyTorch reference.
      max_k_tile: optional cap on the K tile (testing / VMEM tuning).
    """
    a, b, c, d = x.shape
    M, K = a * b, c * d
    inv_total = 1.0 / float(a * b * c * d)
    vmem_limit, preferred_tm = _tpu_params()
    budget = int(vmem_limit * 0.6)  # leave slack for double-buffering / scratch

    feats = x.reshape(M, K)

    # Pad the contraction dim only to the next multiple of 128 (lane width).
    # Zero columns are exact for a Gram matrix; padding to a multiple of the
    # K *tile* (old rule) could nearly double K for awkward c*d values.
    K_pad = _round_up(K, 128)

    # Output tiling: single (M, M) block for small M (full-array blocks are
    # always layout-legal); symmetric block tiling for large M.
    tm = None
    if M > _SINGLE_BLOCK_M_CEIL:
        for cand in (preferred_tm, 256, 128):
            if M % cand == 0 and M // cand >= 2:
                tm = cand
                break
    # TODO(synk): for M > 512 that is not a multiple of 128 this falls back to
    # the single-block path; pad M instead if such shapes ever show up.

    if tm is None:
        # ------------------------- single-output-block path ------------------
        # F is streamed from HBM exactly once (reuse = 1): keep it in its input
        # dtype and cast to compute_dtype inside the kernel (avoids a separate
        # XLA convert pass + re-read).  Pure HBM-bandwidth bound for M <= 512,
        # so no v7x dual-TC row split here (it would only re-read the RHS).
        in_itemsize = jnp.dtype(feats.dtype).itemsize
        if K_pad != K:
            feats = jnp.pad(feats, ((0, 0), (0, K_pad - K)))

        # Adaptive K tile: as large as VMEM allows (fewer ~0.35 us grid steps,
        # fewer f32 read-modify-write passes on the resident output block).
        out_bytes = 2 * M * M * 4
        per_col = 2 * M * in_itemsize + M * jnp.dtype(compute_dtype).itemsize
        max_tk = max((budget - out_bytes) // per_col, 128)
        tk = _pick_k_tile(K_pad, max_tk, max_k_tile)
        nk = K_pad // tk

        kern = _gram_single_nk1 if nk == 1 else _gram_single_acc
        kernel = functools.partial(kern, inv_total=inv_total,
                                   compute_dtype=compute_dtype)
        cost = pl.CostEstimate(
            flops=int(2 * M * M * K_pad),
            transcendentals=0,
            bytes_accessed=int(M * K_pad * in_itemsize + M * M * 4),
        )
        return pl.pallas_call(
            kernel,
            out_shape=jax.ShapeDtypeStruct((M, M), jnp.float32),
            grid_spec=pltpu.PrefetchScalarGridSpec(
                num_scalar_prefetch=0,
                grid=(nk,),
                in_specs=[pl.BlockSpec((M, tk), lambda k: (0, k))],
                out_specs=pl.BlockSpec((M, M), lambda k: (0, 0)),
            ),
            compiler_params=pltpu.CompilerParams(
                dimension_semantics=("arbitrary",),  # K is a reduction axis
                vmem_limit_bytes=vmem_limit,
            ),
            cost_estimate=cost,
        )(feats)

    # ----------------- symmetric tiled path (large channel counts) -----------
    # Only the nb*(nb+1)/2 upper-triangular (i, j >= i) output blocks are
    # computed; the block-index list is scalar-prefetched into SMEM and drives
    # the index_maps.  The lower triangle is mirrored in a JAX epilogue.
    # Each F row-block is re-read (nb + 1) times -> pre-cast to compute_dtype.
    feats = feats.astype(compute_dtype)
    if K_pad != K:
        feats = jnp.pad(feats, ((0, 0), (0, K_pad - K)))
    itemsize = jnp.dtype(compute_dtype).itemsize

    nb = M // tm
    pair_list = [(i, j) for i in range(nb) for j in range(i, nb)]
    n_pairs = len(pair_list)
    bi = jnp.asarray([p[0] for p in pair_list], dtype=jnp.int32)
    bj = jnp.asarray([p[1] for p in pair_list], dtype=jnp.int32)

    out_bytes = 3 * tm * tm * 4
    per_col = 2 * 2 * tm * itemsize  # two operands x double-buffer
    max_tk = max((budget - out_bytes) // per_col, 128)
    tk = _pick_k_tile(K_pad, max_tk, max_k_tile)
    nk = K_pad // tk

    cost = pl.CostEstimate(
        flops=int(2 * n_pairs * tm * tm * K_pad),
        transcendentals=0,
        # each pair streams two (tm, K_pad) slabs and writes one (tm, tm) block
        bytes_accessed=int(2 * n_pairs * tm * K_pad * itemsize
                           + n_pairs * tm * tm * 4),
    )

    if nk == 1:
        kernel = functools.partial(_gram_pairs_nk1, inv_total=inv_total)
        grid = (n_pairs,)
        in_specs = [
            pl.BlockSpec((tm, tk), lambda p, bi, bj: (bi[p], 0)),
            pl.BlockSpec((tm, tk), lambda p, bi, bj: (bj[p], 0)),
        ]
        out_specs = pl.BlockSpec((tm, tm), lambda p, bi, bj: (bi[p], bj[p]))
        sem = ("parallel",)
    else:
        kernel = functools.partial(_gram_pairs_acc, inv_total=inv_total)
        grid = (n_pairs, nk)
        in_specs = [
            pl.BlockSpec((tm, tk), lambda p, k, bi, bj: (bi[p], k)),
            pl.BlockSpec((tm, tk), lambda p, k, bi, bj: (bj[p], k)),
        ]
        out_specs = pl.BlockSpec((tm, tm), lambda p, k, bi, bj: (bi[p], bj[p]))
        sem = ("parallel", "arbitrary")

    G_upper = pl.pallas_call(
        kernel,
        out_shape=jax.ShapeDtypeStruct((M, M), jnp.float32),
        grid_spec=pltpu.PrefetchScalarGridSpec(
            num_scalar_prefetch=2,
            grid=grid,
            in_specs=in_specs,
            out_specs=out_specs,
        ),
        compiler_params=pltpu.CompilerParams(
            dimension_semantics=sem,
            vmem_limit_bytes=vmem_limit,
        ),
        cost_estimate=cost,
    )(bi, bj, feats, feats)

    # Uncomputed lower blocks contain garbage; triu (a select) masks them out
    # before mirroring the computed upper triangle.
    return jnp.triu(G_upper) + jnp.triu(G_upper, 1).T


class StyleLossG:
    """JAX/Pallas port of the PyTorch StyleLossG module.

    __init__ precomputes the target Gram matrix.  __call__ computes the
    input's Gram, stores the MSE against the target in self.loss and returns
    the input unchanged (matching the PyTorch semantics).
    """

    def __init__(self, target_feature):
        self.target = gram_matrix(target_feature)
        self.loss = None

    def __call__(self, x):
        G = gram_matrix(x)
        # F.mse_loss between two small (M, M) matrices: plain JAX on the
        # kernel output (no resident target block / 1-lane output in-kernel).
        # TODO(synk): self.loss is eager Python side-state (as in the PyTorch
        # module); under jax.jit return (x, loss) explicitly instead.
        self.loss = jnp.mean((G - self.target) ** 2)
        return x


if __name__ == "__main__":
    key = jax.random.PRNGKey(0)
    ks = jax.random.split(key, 8)

    def ref_gram(t):
        aa, bb, cc, dd = t.shape
        # Same bf16-operand / f32-accumulation numerics as the kernel.
        f = t.reshape(aa * bb, cc * dd).astype(jnp.bfloat16).astype(jnp.float32)
        G = jnp.dot(f, f.T, precision=jax.lax.Precision.HIGHEST)
        return G / (aa * bb * cc * dd)

    def check_gram(x_, label, **kw):
        G = jax.block_until_ready(gram_matrix(x_, **kw))
        G_ref = ref_gram(x_)
        assert jnp.allclose(G, G_ref, rtol=2e-3, atol=1e-6), (
            label, float(jnp.max(jnp.abs(G - G_ref))))
        return G

    # Case 1: nominal small shape -> single-output-block, nk == 1 fast path.
    a, b, c, d = 2, 4, 16, 16
    tgt1 = jax.random.normal(ks[0], (a, b, c, d), dtype=jnp.float32)
    x1 = jax.random.normal(ks[1], (a, b, c, d), dtype=jnp.float32)
    check_gram(x1, "case1")
    mod1 = StyleLossG(tgt1)
    out1 = jax.block_until_ready(mod1(x1))
    ref_loss1 = jnp.mean((ref_gram(x1) - ref_gram(tgt1)) ** 2)
    assert out1.shape == x1.shape and bool(jnp.all(out1 == x1))
    assert jnp.allclose(mod1.loss, ref_loss1, rtol=5e-3, atol=1e-12), (
        float(mod1.loss), float(ref_loss1))

    # Case 2: single-block path with a K-tiled reduction (nk > 1).
    check_gram(x1, "case2", max_k_tile=128)

    # Case 3: large channel count -> symmetric upper-triangular tiled path;
    # c*d = 64 also exercises the pad-to-128 lane padding.  nk == 1.
    tgt3 = jax.random.normal(ks[2], (1, 768, 8, 8), dtype=jnp.float32)
    x3 = jax.random.normal(ks[3], (1, 768, 8, 8), dtype=jnp.float32)
    check_gram(x3, "case3")
    mod3 = StyleLossG(tgt3)
    out3 = jax.block_until_ready(mod3(x3))
    ref_loss3 = jnp.mean((ref_gram(x3) - ref_gram(tgt3)) ** 2)
    assert out3.shape == x3.shape and bool(jnp.all(out3 == x3))
    assert jnp.allclose(mod3.loss, ref_loss3, rtol=5e-3, atol=1e-12), (
        float(mod3.loss), float(ref_loss3))

    # Case 4: symmetric tiled path with a K-tiled reduction (nk > 1).
    x4 = jax.random.normal(ks[4], (1, 768, 16, 16), dtype=jnp.float32)
    check_gram(x4, "case4", max_k_tile=128)

    print("KERNEL_OK")
</pallas_src>

<mosaic_0001>
module attributes {stable_mosaic.version = 11 : i64} {
  func.func @_gram_single_nk1(%arg0: i32, %arg1: memref<8x256xf32, #tpu.memory_space<vmem>>, %arg2: memref<8x8xf32, #tpu.memory_space<vmem>>) attributes {dimension_semantics = [#tpu.dimension_semantics<arbitrary>], iteration_bounds = array<i64: 1>, scalar_prefetch = 0 : i64, scratch_operands = 0 : i64, tpu.core_type = #tpu.core_type<tc>, window_params = [{transform_indices = @transform_0, window_bounds = array<i64: 8, 256>}, {pipeline_mode = #tpu.pipeline_mode<synchronous>, transform_indices = @transform_1, window_bounds = array<i64: 8, 8>}]} {
    %c0 = arith.constant 0 : index
    %c0_0 = arith.constant 0 : index
    %0 = vector.load %arg1[%c0, %c0_0] : memref<8x256xf32, #tpu.memory_space<vmem>>, vector<8x256xf32>
    %1 = arith.truncf %0 : vector<8x256xf32> to vector<8x256xbf16>
    %cst = arith.constant dense<0.000000e+00> : vector<8x8xf32>
    %2 = tpu.matmul %1, %1, %cst {dimension_numbers = #tpu.dot_dimension_numbers<[1], [1], [0], [0], [0, 0, 1, 0], [], []>} : vector<8x256xbf16>, vector<8x256xbf16>, vector<8x8xf32> -> vector<8x8xf32>
    %cst_1 = arith.constant 4.8828125E-4 : f32
    %3 = vector.broadcast %cst_1 : f32 to vector<8x8xf32>
    %4 = arith.mulf %2, %3 : vector<8x8xf32>
    %c0_2 = arith.constant 0 : index
    %c0_3 = arith.constant 0 : index
    %5 = vector.load %arg2[%c0_2, %c0_3] : memref<8x8xf32, #tpu.memory_space<vmem>>, vector<8x8xf32>
    tpu.vector_store %arg2[%c0_2, %c0_3], %4 {strides = array<i32>} : memref<8x8xf32, #tpu.memory_space<vmem>>, vector<8x8xf32>,
    return
  }
  func.func @transform_0(%arg0: i32) -> (i32, i32) {
    %c0_i32 = arith.constant 0 : i32
    %c0_i32_0 = arith.constant 0 : i32
    return %c0_i32, %arg0 : i32, i32
  }
  func.func @transform_1(%arg0: i32) -> (i32, i32) {
    %c0_i32 = arith.constant 0 : i32
    %c0_i32_0 = arith.constant 0 : i32
    %c0_i32_1 = arith.constant 0 : i32
    return %c0_i32, %c0_i32_0 : i32, i32
  }
}

</mosaic_0001>

<llo_original>
// kernel: tpu_custom_call.1
$region0: #{tpu_custom_call.1}
  #allocation0 [shape = 'u32[]', space=smem, size = 0x4, offset = 0x4, fixed_abs, tag = 'smem constant byte address 0x4 - core index']
  #allocation1 [shape = 'u32[72,128]{1,0:T(1,128)}', space=vmem, size = 0x9000, scoped, tag = 'internal scratch']
  %s0 = inlined_call_operand.hbm [shape: f32[8,256], index: 0, kind: input, shape index: {}]
  %s1 = inlined_call_operand.hbm [shape: f32[8,8], index: 1, kind: output, shape index: {}]
  %s2 = sld [smem:[#allocation0]]
  $region18: #{tpu_custom_call.1} parent=0
    _
  %s4 = ssub.s32 1, %s2
  %s5 = scalar_select 0, %s4, %s2
  $region1: #{tpu_custom_call.1} parent=0
    #allocation2 [shape = 'u8[8192]{0}', space=vmem, size = 0x2000, scoped, tag = 'input window, operand 0, single buffered']
    #allocation3 [shape = 's32[1]{0}', space=sflag, size = 0x4, scoped, tag = 'scoped memory for tpu_custom_call.1']
    #allocation4 [shape = 's32[1]{0}', space=sflag, size = 0x4, scoped, tag = 'scoped memory for tpu_custom_call.1']
    #allocation5 [shape = 'u8[4096]{0}', space=vmem, size = 0x1000, scoped, tag = 'output window, operand 0, single buffered']
    %6 = vsyncpa [#allocation3], 0
    %7 = vsyncpa [#allocation4], 0
    // Predicated region
    $region2: #{tpu_custom_call.1} parent=1 // pred_check
      _
    $region3: #{tpu_custom_call.1} parent=1 // pred_check_branch
      %9 = sbr.rel (0) target = $region5
    $region4: #{tpu_custom_call.1} parent=1 // pred_region
      %11 = vsyncadd [#allocation3], 0
      %s13 = sshll.u32 %s0, 4
      %s14 = int_to_ptr.hbm [resolvable:$true] %s13
      %s15 = sshll.u32 [#allocation2], 4
      %s16 = int_to_ptr.vmem [resolvable:$true] %s15
      %18 = dma.hbm_to_vmem [thread:$0]  %s14, 256, %s16, [#allocation3]
    $region5: #{tpu_custom_call.1} parent=1 // pred_fallthru
      _
    // Predicated region
    $region6: #{tpu_custom_call.1} parent=1 // pred_check
      _
    $region7: #{tpu_custom_call.1} parent=1 // pred_check_branch
      %20 = sbr.rel (0) target = $region9
    $region8: #{tpu_custom_call.1} parent=1 // pred_region
      %22 = dma.done [#allocation3], 256
    $region9: #{tpu_custom_call.1} parent=1 // pred_fallthru
      _
    %v24 = vld [vmem:[#allocation2] sm:$0xff]
    %v25 = vld [vmem:[#allocation2 + $0x8] sm:$0xff]
    %v26 = vpack.c.bf16 %v24, %v24
    %v27 = vpack.c.bf16 %v25, %v25
    %28 = vmatpush.bf16.xpose.msra.mxu0 0
    %29 = vmatpush.bf16.xpose.msra.mxu0 0
    %30 = vmatpush.bf16.xpose.msra.mxu0 0
    %31 = vmatpush.bf16.xpose.msra.mxu0 0
    %32 = vmatpush.bf16.xpose.msra.mxu0 0
    %33 = vmatpush.bf16.xpose.msra.mxu0 0
    %34 = vmatpush.bf16.xpose.msra.mxu0 0
    %35 = vmatpush.bf16.xpose.msra.mxu0 %v26
    %36 = vmatmul.bf16.gmra.mxu0 %v26
    %v37 = vpop.f32.mrf.mxu0
    %v38 = vadd.f32 0.0, %v37
    %v39 = vpop.f32.mrf.mxu0
    %40 = vdwg.mxu0
    %41 = vmatpush.bf16.xpose.msra.mxu0 0
    %42 = vmatpush.bf16.xpose.msra.mxu0 0
    %43 = vmatpush.bf16.xpose.msra.mxu0 0
    %44 = vmatpush.bf16.xpose.msra.mxu0 0
    %45 = vmatpush.bf16.xpose.msra.mxu0 0
    %46 = vmatpush.bf16.xpose.msra.mxu0 0
    %47 = vmatpush.bf16.xpose.msra.mxu0 0
    %48 = vmatpush.bf16.xpose.msra.mxu0 %v27
    %49 = vmatmul.bf16.gmra.mxu0 %v27
    %v50 = vpop.f32.mrf.mxu0
    %v51 = vadd.f32 %v38, %v50
    %v52 = vpop.f32.mrf.mxu0
    %53 = vdwg.mxu0
    %v54 = vmul.f32 %v51, 0.00048828125
    %vm55 = vcmask 64512
    %56 = vst.msk [vmem:[#allocation5] sm:$0xff] %vm55, %v54
    // Predicated region
    $region10: #{tpu_custom_call.1} parent=1 // pred_check
      _
    $region11: #{tpu_custom_call.1} parent=1 // pred_check_branch
      %58 = sbr.rel (0) target = $region13
    $region12: #{tpu_custom_call.1} parent=1 // pred_region
      %60 = vsyncadd [#allocation4], 0
      %s62 = sshll.u32 [#allocation5], 4
      %s63 = int_to_ptr.vmem [resolvable:$true] %s62
      %s64 = sshll.u32 %s1, 4
      %s65 = int_to_ptr.hbm [resolvable:$true] %s64
      %67 = dma.vmem_to_hbm [thread:$0]  %s63, 128, %s65, [#allocation4]
    $region13: #{tpu_custom_call.1} parent=1 // pred_fallthru
      _
    // Predicated region
    $region14: #{tpu_custom_call.1} parent=1 // pred_check
      _
    $region15: #{tpu_custom_call.1} parent=1 // pred_check_branch
      %69 = sbr.rel (0) target = $region17
    $region16: #{tpu_custom_call.1} parent=1 // pred_region
      %71 = dma.done [#allocation4], 128
    $region17: #{tpu_custom_call.1} parent=1 // pred_fallthru
      _
    %72 = vsyncpa [#allocation3], 1
    %73 = vsyncpa [#allocation4], 1

</llo_original>
